<compile_context>
chip_gen: v6e
topology: v6e:2x2x1
jax: 0.10.0
libtpu: 0.0.40
codegen_flags: <defaults>
</compile_context>

<pallas_src>
import jax
import jax.numpy as jnp
from jax.experimental import pallas as pl
from jax.experimental.pallas import tpu as pltpu

D_IN, D_H1, D_H2, D_OUT = 44, 64, 32, 2


def _leaky_relu(x, slope=0.1):
    return jnp.where(x > 0, x, slope * x)


def mlp_kernel(xT_ref, w1_ref, b1_ref, w2_ref, b2_ref, w3_ref, b3_ref, oT_ref):
    # Batch is on the lane (last) axis.  Weights/biases are full-array VMEM
    # residents; only the xT / oT tiles stream per grid step.
    xT = xT_ref[...].astype(jnp.float32)                                    # [44, TB]
    h1 = jnp.dot(w1_ref[...], xT, preferred_element_type=jnp.float32) + b1_ref[...]
    h1 = _leaky_relu(h1)                                                    # [64, TB]
    h2 = jnp.dot(w2_ref[...], h1, preferred_element_type=jnp.float32) + b2_ref[...]
    h2 = _leaky_relu(h2)                                                    # [32, TB]
    out = jnp.dot(w3_ref[...], h2, preferred_element_type=jnp.float32) + b3_ref[...]
    oT_ref[...] = out.astype(oT_ref.dtype)                                  # [2, TB]


def meta_classifier_forward(x, params, *, tile_b=4096):
    """x: [B, 44]; params hold PyTorch-layout weights w[out,in], biases b[out].

    tile_b must be a multiple of 128 (used only when B > tile_b).  Callers that
    can supply x already in bf16 avoid the wrapper-side cast pass.
    """
    B = x.shape[0]
    TB = B if B <= tile_b else tile_b
    grid = (pl.cdiv(B, TB),)

    # Layout plumbing (not compute): batch onto lanes, bf16 input stream.
    xT = jnp.asarray(x, jnp.bfloat16).T                                     # [44, B]
    w1 = params["w1"].astype(jnp.float32)                                   # [64, 44]
    w2 = params["w2"].astype(jnp.float32)                                   # [32, 64]
    w3 = params["w3"].astype(jnp.float32)                                   # [ 2, 32]
    b1 = params["b1"].reshape(D_H1, 1).astype(jnp.float32)
    b2 = params["b2"].reshape(D_H2, 1).astype(jnp.float32)
    b3 = params["b3"].reshape(D_OUT, 1).astype(jnp.float32)

    def resident(shape):  # full-array block, constant index -> stays in VMEM
        return pl.BlockSpec(shape, lambda i: (0, 0))

    weight_bytes = 4 * (D_H1 * D_IN + D_H1 + D_H2 * D_H1 + D_H2 + D_OUT * D_H2 + D_OUT)
    cost = pl.CostEstimate(
        flops=2 * B * (D_IN * D_H1 + D_H1 * D_H2 + D_H2 * D_OUT),
        transcendentals=0,
        bytes_accessed=B * D_IN * 2 + B * D_OUT * 4 + weight_bytes,
    )

    outT = pl.pallas_call(
        mlp_kernel,
        out_shape=jax.ShapeDtypeStruct((D_OUT, B), jnp.float32),
        grid=grid,
        in_specs=[
            pl.BlockSpec((D_IN, TB), lambda i: (0, i)),   # streamed x tile
            resident((D_H1, D_IN)), resident((D_H1, 1)),
            resident((D_H2, D_H1)), resident((D_H2, 1)),
            resident((D_OUT, D_H2)), resident((D_OUT, 1)),
        ],
        out_specs=pl.BlockSpec((D_OUT, TB), lambda i: (0, i)),  # lane-dense output
        compiler_params=pltpu.CompilerParams(
            dimension_semantics=("parallel",),            # 2 TCs on v7x
        ),
        cost_estimate=cost,
    )(xT, w1, b1, w2, b2, w3, b3)

    return outT.T                                                           # [B, 2]


def init_params(key):
    """PyTorch nn.Linear default init: uniform(-1/sqrt(fan_in), 1/sqrt(fan_in)).
    Weights stored in PyTorch layout [out, in]; biases [out]."""
    dims = [(D_IN, D_H1), (D_H1, D_H2), (D_H2, D_OUT)]
    params = {}
    for i, (fin, fout) in enumerate(dims, start=1):
        key, kw, kb = jax.random.split(key, 3)
        bound = 1.0 / jnp.sqrt(jnp.float32(fin))
        params[f"w{i}"] = jax.random.uniform(
            kw, (fout, fin), jnp.float32, minval=-bound, maxval=bound)
        params[f"b{i}"] = jax.random.uniform(
            kb, (fout,), jnp.float32, minval=-bound, maxval=bound)
    return params


def reference_forward(x, params):
    h1 = _leaky_relu(x @ params["w1"].T + params["b1"])
    h2 = _leaky_relu(h1 @ params["w2"].T + params["b2"])
    return h2 @ params["w3"].T + params["b3"]


if __name__ == "__main__":
    key = jax.random.PRNGKey(0)
    key, kx1, kx2 = jax.random.split(key, 3)
    params = init_params(key)

    # Case 1: small batch, single grid step (TB == B).
    B = 8
    x = jax.random.normal(kx1, (B, 44), jnp.float32)
    out = jax.block_until_ready(meta_classifier_forward(x, params))
    x_q = x.astype(jnp.bfloat16).astype(jnp.float32)  # kernel streams bf16 x
    ref = reference_forward(x_q, params)
    assert out.shape == (B, 2), out.shape
    assert jnp.allclose(out, ref, atol=1e-2, rtol=1e-2), "mismatch vs reference (B=8)"

    # Case 2: multi-step batch grid with a partial last tile (exercises the
    # pipelined path, resident weights and masked edge-block writeback).
    B2 = 200
    x2 = jax.random.normal(kx2, (B2, 44), jnp.float32)
    out2 = jax.block_until_ready(meta_classifier_forward(x2, params, tile_b=128))
    ref2 = reference_forward(x2.astype(jnp.bfloat16).astype(jnp.float32), params)
    assert out2.shape == (B2, 2), out2.shape
    assert jnp.allclose(out2, ref2, atol=1e-2, rtol=1e-2), "mismatch vs reference (B=200)"

    print("KERNEL_OK")
</pallas_src>

<mosaic_0001>
module attributes {stable_mosaic.version = 11 : i64} {
  func.func @mlp_kernel(%arg0: i32, %arg1: memref<44x8xbf16, #tpu.memory_space<vmem>>, %arg2: memref<64x44xf32, #tpu.memory_space<vmem>>, %arg3: memref<64x1xf32, #tpu.memory_space<vmem>>, %arg4: memref<32x64xf32, #tpu.memory_space<vmem>>, %arg5: memref<32x1xf32, #tpu.memory_space<vmem>>, %arg6: memref<2x32xf32, #tpu.memory_space<vmem>>, %arg7: memref<2x1xf32, #tpu.memory_space<vmem>>, %arg8: memref<2x8xf32, #tpu.memory_space<vmem>>) attributes {dimension_semantics = [#tpu.dimension_semantics<parallel>], iteration_bounds = array<i64: 1>, scalar_prefetch = 0 : i64, scratch_operands = 0 : i64, tpu.core_type = #tpu.core_type<tc>, window_params = [{transform_indices = @transform_0, window_bounds = array<i64: 44, 8>}, {pipeline_mode = #tpu.pipeline_mode<synchronous>, transform_indices = @transform_1, window_bounds = array<i64: 64, 44>}, {pipeline_mode = #tpu.pipeline_mode<synchronous>, transform_indices = @transform_2, window_bounds = array<i64: 64, 1>}, {pipeline_mode = #tpu.pipeline_mode<synchronous>, transform_indices = @transform_3, window_bounds = array<i64: 32, 64>}, {pipeline_mode = #tpu.pipeline_mode<synchronous>, transform_indices = @transform_4, window_bounds = array<i64: 32, 1>}, {pipeline_mode = #tpu.pipeline_mode<synchronous>, transform_indices = @transform_5, window_bounds = array<i64: 2, 32>}, {pipeline_mode = #tpu.pipeline_mode<synchronous>, transform_indices = @transform_6, window_bounds = array<i64: 2, 1>}, {transform_indices = @transform_7, window_bounds = array<i64: 2, 8>}]} {
    %c0 = arith.constant 0 : index
    %c0_0 = arith.constant 0 : index
    %0 = vector.load %arg1[%c0, %c0_0] : memref<44x8xbf16, #tpu.memory_space<vmem>>, vector<44x8xbf16>
    %1 = arith.extf %0 : vector<44x8xbf16> to vector<44x8xf32>
    %c0_1 = arith.constant 0 : index
    %c0_2 = arith.constant 0 : index
    %2 = vector.load %arg2[%c0_1, %c0_2] : memref<64x44xf32, #tpu.memory_space<vmem>>, vector<64x44xf32>
    %cst = arith.constant dense<0.000000e+00> : vector<64x8xf32>
    %3 = tpu.matmul %2, %1, %cst {dimension_numbers = #tpu.dot_dimension_numbers<[1], [0], [0], [1], [0, 0, 1, 1], [], []>} : vector<64x44xf32>, vector<44x8xf32>, vector<64x8xf32> -> vector<64x8xf32>
    %c0_3 = arith.constant 0 : index
    %c0_4 = arith.constant 0 : index
    %4 = vector.load %arg3[%c0_3, %c0_4] : memref<64x1xf32, #tpu.memory_space<vmem>>, vector<64x1xf32>
    %5 = vector.broadcast %4 : vector<64x1xf32> to vector<64x8xf32>
    %6 = arith.addf %3, %5 : vector<64x8xf32>
    %cst_5 = arith.constant 0.000000e+00 : f32
    %7 = vector.broadcast %cst_5 : f32 to vector<64x8xf32>
    %8 = arith.cmpf ogt, %6, %7 : vector<64x8xf32>
    %cst_6 = arith.constant 1.000000e-01 : f32
    %9 = vector.broadcast %cst_6 : f32 to vector<64x8xf32>
    %10 = arith.mulf %9, %6 : vector<64x8xf32>
    %11 = arith.select %8, %6, %10 : vector<64x8xi1>, vector<64x8xf32>
    %c0_7 = arith.constant 0 : index
    %c0_8 = arith.constant 0 : index
    %12 = vector.load %arg4[%c0_7, %c0_8] : memref<32x64xf32, #tpu.memory_space<vmem>>, vector<32x64xf32>
    %cst_9 = arith.constant dense<0.000000e+00> : vector<32x8xf32>
    %13 = tpu.matmul %12, %11, %cst_9 {dimension_numbers = #tpu.dot_dimension_numbers<[1], [0], [0], [1], [0, 0, 1, 1], [], []>} : vector<32x64xf32>, vector<64x8xf32>, vector<32x8xf32> -> vector<32x8xf32>
    %c0_10 = arith.constant 0 : index
    %c0_11 = arith.constant 0 : index
    %14 = vector.load %arg5[%c0_10, %c0_11] : memref<32x1xf32, #tpu.memory_space<vmem>>, vector<32x1xf32>
    %15 = vector.broadcast %14 : vector<32x1xf32> to vector<32x8xf32>
    %16 = arith.addf %13, %15 : vector<32x8xf32>
    %cst_12 = arith.constant 0.000000e+00 : f32
    %17 = vector.broadcast %cst_12 : f32 to vector<32x8xf32>
    %18 = arith.cmpf ogt, %16, %17 : vector<32x8xf32>
    %cst_13 = arith.constant 1.000000e-01 : f32
    %19 = vector.broadcast %cst_13 : f32 to vector<32x8xf32>
    %20 = arith.mulf %19, %16 : vector<32x8xf32>
    %21 = arith.select %18, %16, %20 : vector<32x8xi1>, vector<32x8xf32>
    %c0_14 = arith.constant 0 : index
    %c0_15 = arith.constant 0 : index
    %22 = vector.load %arg6[%c0_14, %c0_15] : memref<2x32xf32, #tpu.memory_space<vmem>>, vector<2x32xf32>
    %cst_16 = arith.constant dense<0.000000e+00> : vector<2x8xf32>
    %23 = tpu.matmul %22, %21, %cst_16 {dimension_numbers = #tpu.dot_dimension_numbers<[1], [0], [0], [1], [0, 0, 1, 1], [], []>} : vector<2x32xf32>, vector<32x8xf32>, vector<2x8xf32> -> vector<2x8xf32>
    %c0_17 = arith.constant 0 : index
    %c0_18 = arith.constant 0 : index
    %24 = vector.load %arg7[%c0_17, %c0_18] : memref<2x1xf32, #tpu.memory_space<vmem>>, vector<2x1xf32>
    %25 = vector.broadcast %24 : vector<2x1xf32> to vector<2x8xf32>
    %26 = arith.addf %23, %25 : vector<2x8xf32>
    %c0_19 = arith.constant 0 : index
    %c0_20 = arith.constant 0 : index
    %27 = vector.load %arg8[%c0_19, %c0_20] : memref<2x8xf32, #tpu.memory_space<vmem>>, vector<2x8xf32>
    tpu.vector_store %arg8[%c0_19, %c0_20], %26 {strides = array<i32>} : memref<2x8xf32, #tpu.memory_space<vmem>>, vector<2x8xf32>,
    return
  }
  func.func @transform_0(%arg0: i32) -> (i32, i32) {
    %c0_i32 = arith.constant 0 : i32
    %c0_i32_0 = arith.constant 0 : i32
    return %c0_i32, %arg0 : i32, i32
  }
  func.func @transform_1(%arg0: i32) -> (i32, i32) {
    %c0_i32 = arith.constant 0 : i32
    %c0_i32_0 = arith.constant 0 : i32
    %c0_i32_1 = arith.constant 0 : i32
    return %c0_i32, %c0_i32_0 : i32, i32
  }
  func.func @transform_2(%arg0: i32) -> (i32, i32) {
    %c0_i32 = arith.constant 0 : i32
    %c0_i32_0 = arith.constant 0 : i32
    %c0_i32_1 = arith.constant 0 : i32
    return %c0_i32, %c0_i32_0 : i32, i32
  }
  func.func @transform_3(%arg0: i32) -> (i32, i32) {
    %c0_i32 = arith.constant 0 : i32
    %c0_i32_0 = arith.constant 0 : i32
    %c0_i32_1 = arith.constant 0 : i32
    return %c0_i32, %c0_i32_0 : i32, i32
  }
  func.func @transform_4(%arg0: i32) -> (i32, i32) {
    %c0_i32 = arith.constant 0 : i32
    %c0_i32_0 = arith.constant 0 : i32
    %c0_i32_1 = arith.constant 0 : i32
    return %c0_i32, %c0_i32_0 : i32, i32
  }
  func.func @transform_5(%arg0: i32) -> (i32, i32) {
    %c0_i32 = arith.constant 0 : i32
    %c0_i32_0 = arith.constant 0 : i32
    %c0_i32_1 = arith.constant 0 : i32
    return %c0_i32, %c0_i32_0 : i32, i32
  }
  func.func @transform_6(%arg0: i32) -> (i32, i32) {
    %c0_i32 = arith.constant 0 : i32
    %c0_i32_0 = arith.constant 0 : i32
    %c0_i32_1 = arith.constant 0 : i32
    return %c0_i32, %c0_i32_0 : i32, i32
  }
  func.func @transform_7(%arg0: i32) -> (i32, i32) {
    %c0_i32 = arith.constant 0 : i32
    %c0_i32_0 = arith.constant 0 : i32
    return %c0_i32, %arg0 : i32, i32
  }
}

</mosaic_0001>

<llo_original>
// kernel: tpu_custom_call.1
$region0: #{tpu_custom_call.1}
  #allocation0 [shape = 'u32[]', space=smem, size = 0x4, offset = 0x4, fixed_abs, tag = 'smem constant byte address 0x4 - core index']
  #allocation1 [shape = 'u32[144,128]{1,0:T(1,128)}', space=vmem, size = 0x12000, scoped, tag = 'internal scratch']
  %s0 = inlined_call_operand.vmem [shape: bf16[44,8], index: 0, kind: input, shape index: {}]
  %s1 = inlined_call_operand.vmem [shape: f32[64,44], index: 1, kind: input, shape index: {}]
  %s2 = inlined_call_operand.vmem [shape: f32[64,1], index: 2, kind: input, shape index: {}]
  %s3 = inlined_call_operand.vmem [shape: f32[32,64], index: 3, kind: input, shape index: {}]
  %s4 = inlined_call_operand.vmem [shape: f32[32,1], index: 4, kind: input, shape index: {}]
  %s5 = inlined_call_operand.vmem [shape: f32[2,32], index: 5, kind: input, shape index: {}]
  %s6 = inlined_call_operand.vmem [shape: f32[2,1], index: 6, kind: input, shape index: {}]
  %s7 = inlined_call_operand.hbm [shape: f32[2,8], index: 7, kind: output, shape index: {}]
  %s8 = sld [smem:[#allocation0]]
  $region38: #{tpu_custom_call.1} parent=0
    _
  %s10 = ssub.s32 1, %s8
  %s11 = scalar_select 0, %s10, %s8
  $region1: #{tpu_custom_call.1} parent=0
    #allocation2 [shape = 'u8[1024]{0}', space=vmem, size = 0x400, scoped, tag = 'output window, operand 0, single buffered']
    #allocation3 [shape = 's32[1]{0}', space=sflag, size = 0x4, scoped, tag = 'scoped memory for tpu_custom_call.1']
    %12 = vsyncpa [#allocation3], 0
    // Predicated region
    $region2: #{tpu_custom_call.1} parent=1 // pred_check
      _
    $region3: #{tpu_custom_call.1} parent=1 // pred_check_branch
      %14 = sbr.rel (0) target = $region5
    $region4: #{tpu_custom_call.1} parent=1 // pred_region
      _
    $region5: #{tpu_custom_call.1} parent=1 // pred_fallthru
      _
    // Predicated region
    $region6: #{tpu_custom_call.1} parent=1 // pred_check
      _
    $region7: #{tpu_custom_call.1} parent=1 // pred_check_branch
      %16 = sbr.rel (0) target = $region9
    $region8: #{tpu_custom_call.1} parent=1 // pred_region
      _
    $region9: #{tpu_custom_call.1} parent=1 // pred_fallthru
      _
    // Predicated region
    $region10: #{tpu_custom_call.1} parent=1 // pred_check
      _
    $region11: #{tpu_custom_call.1} parent=1 // pred_check_branch
      %18 = sbr.rel (0) target = $region13
    $region12: #{tpu_custom_call.1} parent=1 // pred_region
      _
    $region13: #{tpu_custom_call.1} parent=1 // pred_fallthru
      _
    // Predicated region
    $region14: #{tpu_custom_call.1} parent=1 // pred_check
      _
    $region15: #{tpu_custom_call.1} parent=1 // pred_check_branch
      %20 = sbr.rel (0) target = $region17
    $region16: #{tpu_custom_call.1} parent=1 // pred_region
      _
    $region17: #{tpu_custom_call.1} parent=1 // pred_fallthru
      _
    // Predicated region
    $region18: #{tpu_custom_call.1} parent=1 // pred_check
      _
    $region19: #{tpu_custom_call.1} parent=1 // pred_check_branch
      %22 = sbr.rel (0) target = $region21
    $region20: #{tpu_custom_call.1} parent=1 // pred_region
      _
    $region21: #{tpu_custom_call.1} parent=1 // pred_fallthru
      _
    // Predicated region
    $region22: #{tpu_custom_call.1} parent=1 // pred_check
      _
    $region23: #{tpu_custom_call.1} parent=1 // pred_check_branch
      %24 = sbr.rel (0) target = $region25
    $region24: #{tpu_custom_call.1} parent=1 // pred_region
      _
    $region25: #{tpu_custom_call.1} parent=1 // pred_fallthru
      _
    // Predicated region
    $region26: #{tpu_custom_call.1} parent=1 // pred_check
      _
    $region27: #{tpu_custom_call.1} parent=1 // pred_check_branch
      %26 = sbr.rel (0) target = $region29
    $region28: #{tpu_custom_call.1} parent=1 // pred_region
      _
    $region29: #{tpu_custom_call.1} parent=1 // pred_fallthru
      _
    %v27 = vld [vmem:[%s0] sm:$0xf]
    %v28 = vld [vmem:[%s0 + $0x4] sm:$0xf]
    %v29 = vld [vmem:[%s0 + $0x8] sm:$0xf]
    %v30 = vld [vmem:[%s0 + $0xc] sm:$0xf]
    %v31 = vld [vmem:[%s0 + $0x10] sm:$0xf]
    %v32 = vld [vmem:[%s0 + $0x14] sm:$0x3]
    %v33 = vunpack.c.l.bf16 %v27
    %v34 = vunpack.c.l.bf16 %v28
    %v35 = vunpack.c.l.bf16 %v29
    %v36 = vunpack.c.l.bf16 %v30
    %v37 = vunpack.c.l.bf16 %v31
    %v38 = vunpack.c.l.bf16 %v32
    %v39 = vld [vmem:[%s1] sm:$0xff]
    %v40 = vld [vmem:[%s1 + $0x8] sm:$0xff]
    %v41 = vld [vmem:[%s1 + $0x10] sm:$0xff]
    %v42 = vld [vmem:[%s1 + $0x18] sm:$0xff]
    %v43 = vld [vmem:[%s1 + $0x20] sm:$0xff]
    %v44 = vld [vmem:[%s1 + $0x28] sm:$0xff]
    %v45 = vld [vmem:[%s1 + $0x30] sm:$0xff]
    %v46 = vld [vmem:[%s1 + $0x38] sm:$0xff]
    %v47 = vld [vmem:[%s2] sm:$0xff]
    %v48 = vld [vmem:[%s2 + $0x8] sm:$0xff]
    %v49 = vld [vmem:[%s2 + $0x10] sm:$0xff]
    %v50 = vld [vmem:[%s2 + $0x18] sm:$0xff]
    %v51 = vld [vmem:[%s2 + $0x20] sm:$0xff]
    %v52 = vld [vmem:[%s2 + $0x28] sm:$0xff]
    %v53 = vld [vmem:[%s2 + $0x30] sm:$0xff]
    %v54 = vld [vmem:[%s2 + $0x38] sm:$0xff]
    %56 = vset.pattern.permute.xlu0 0
    %57 = vperm.xlu0 %56, %v47
    %v58 = vpop.permute.xlu0 %57
    %61 = vset.pattern.permute.xlu0 0
    %62 = vperm.xlu0 %61, %v48
    %v63 = vpop.permute.xlu0 %62
    %66 = vset.pattern.permute.xlu0 0
    %67 = vperm.xlu0 %66, %v49
    %v68 = vpop.permute.xlu0 %67
    %71 = vset.pattern.permute.xlu0 0
    %72 = vperm.xlu0 %71, %v50
    %v73 = vpop.permute.xlu0 %72
    %76 = vset.pattern.permute.xlu0 0
    %77 = vperm.xlu0 %76, %v51
    %v78 = vpop.permute.xlu0 %77
    %81 = vset.pattern.permute.xlu0 0
    %82 = vperm.xlu0 %81, %v52
    %v83 = vpop.permute.xlu0 %82
    %86 = vset.pattern.permute.xlu0 0
    %87 = vperm.xlu0 %86, %v53
    %v88 = vpop.permute.xlu0 %87
    %91 = vset.pattern.permute.xlu0 0
    %92 = vperm.xlu0 %91, %v54
    %v93 = vpop.permute.xlu0 %92
    %vm95 = vcmask 359424
    %v97 = vsel %vm95, %v39, 0
    %v100 = vsel %vm95, %v40, 0
    %v103 = vsel %vm95, %v41, 0
    %v106 = vsel %vm95, %v42, 0
    %v109 = vsel %vm95, %v43, 0
    %v112 = vsel %vm95, %v44, 0
    %v115 = vsel %vm95, %v45, 0
    %v118 = vsel %vm95, %v46, 0
    %vm120 = vcmask 1043456
    %v122 = vsel %vm120, %v38, 0
    %124 = vmatprep.subr.mxu0 0.0
    %125 = vmatpush1.msra.mxu0 0.0
    %126 = vmatprep.subr.mxu0 0.0
    %127 = vmatpush1.msra.mxu0 0.0
    %128 = vmatprep.subr.mxu0 0.0
    %129 = vmatpush1.msra.mxu0 0.0
    %130 = vmatprep.subr.mxu0 0.0
    %131 = vmatpush1.msra.mxu0 0.0
    %132 = vmatprep.subr.mxu0 0.0
    %133 = vmatpush1.msra.mxu0 0.0
    %134 = vmatprep.subr.mxu0 0.0
    %135 = vmatpush1.msra.mxu0 0.0
    %136 = vmatprep.subr.mxu0 0.0
    %137 = vmatpush1.msra.mxu0 0.0
    %138 = vmatprep.subr.mxu0 0.0
    %139 = vmatpush1.msra.mxu0 0.0
    %140 = vmatprep.subr.mxu0 0.0
    %141 = vmatpush1.msra.mxu0 0.0
    %142 = vmatprep.subr.mxu0 0.0
    %143 = vmatpush1.msra.mxu0 0.0
    %144 = vmatprep.subr.mxu0 0.0
    %145 = vmatpush1.msra.mxu0 %v122
    %146 = vmatprep.subr.mxu0 0.0
    %147 = vmatpush1.msra.mxu0 %v37
    %148 = vmatprep.subr.mxu0 0.0
    %149 = vmatpush1.msra.mxu0 %v36
    %150 = vmatprep.subr.mxu0 0.0
    %151 = vmatpush1.msra.mxu0 %v35
    %152 = vmatprep.subr.mxu0 0.0
    %153 = vmatpush1.msra.mxu0 %v34
    %154 = vmatprep.subr.mxu0 0.0
    %155 = vmatpush1.msra.mxu0 %v33
    %156 = vmatprep.subr.mxu0 0.0
    %157 = vmatpush2.msra.mxu0 0.0
    %158 = vmatprep.subr.mxu0 0.0
    %159 = vmatpush2.msra.mxu0 0.0
    %160 = vmatprep.subr.mxu0 0.0
    %161 = vmatpush2.msra.mxu0 0.0
    %162 = vmatprep.subr.mxu0 0.0
    %163 = vmatpush2.msra.mxu0 0.0
    %164 = vmatprep.subr.mxu0 0.0
    %165 = vmatpush2.msra.mxu0 0.0
    %166 = vmatprep.subr.mxu0 0.0
    %167 = vmatpush2.msra.mxu0 0.0
    %168 = vmatprep.subr.mxu0 0.0
    %169 = vmatpush2.msra.mxu0 0.0
    %170 = vmatprep.subr.mxu0 0.0
    %171 = vmatpush2.msra.mxu0 0.0
    %172 = vmatprep.subr.mxu0 0.0
    %173 = vmatpush2.msra.mxu0 0.0
    %174 = vmatprep.subr.mxu0 0.0
    %175 = vmatpush2.msra.mxu0 0.0
    %176 = vmatprep.subr.mxu0 0.0
    %177 = vmatpush2.msra.mxu0 0.0
    %178 = vmatprep.subr.mxu0 0.0
    %179 = vmatpush2.msra.mxu0 0.0
    %180 = vmatprep.subr.mxu0 0.0
    %181 = vmatpush2.msra.mxu0 0.0
    %182 = vmatprep.subr.mxu0 0.0
    %183 = vmatpush2.msra.mxu0 0.0
    %184 = vmatprep.subr.mxu0 0.0
    %185 = vmatpush2.msra.mxu0 0.0
    %186 = vmatprep.subr.mxu0 0.0
    %187 = vmatpush2.msra.mxu0 0.0
    %188 = vmatprep.mubr.f32.mxu0 0.0
    %189 = vmatmul.mubr.f32.gmra.mxu0 %v97
    %v190 = vpop.f32.mrf.mxu0
    %v191 = vadd.f32 %v58, %v190
    %v192 = vpop.f32.mrf.mxu0
    %193 = vmatprep.mubr.f32.mxu0 0.0
    %194 = vmatmul.mubr.f32.gmra.mxu0 %v100
    %v195 = vpop.f32.mrf.mxu0
    %v196 = vadd.f32 %v63, %v195
    %v197 = vpop.f32.mrf.mxu0
    %198 = vmatprep.mubr.f32.mxu0 0.0
    %199 = vmatmul.mubr.f32.gmra.mxu0 %v103
    %v200 = vpop.f32.mrf.mxu0
    %v201 = vadd.f32 %v68, %v200
    %v202 = vpop.f32.mrf.mxu0
    %203 = vmatprep.mubr.f32.mxu0 0.0
    %204 = vmatmul.mubr.f32.gmra.mxu0 %v106
    %v205 = vpop.f32.mrf.mxu0
    %v206 = vadd.f32 %v73, %v205
    %v207 = vpop.f32.mrf.mxu0
    %208 = vmatprep.mubr.f32.mxu0 0.0
    %209 = vmatmul.mubr.f32.gmra.mxu0 %v109
    %v210 = vpop.f32.mrf.mxu0
    %v211 = vadd.f32 %v78, %v210
    %v212 = vpop.f32.mrf.mxu0
    %213 = vmatprep.mubr.f32.mxu0 0.0
    %214 = vmatmul.mubr.f32.gmra.mxu0 %v112
    %v215 = vpop.f32.mrf.mxu0
    %v216 = vadd.f32 %v83, %v215
    %v217 = vpop.f32.mrf.mxu0
    %218 = vmatprep.mubr.f32.mxu0 0.0
    %219 = vmatmul.mubr.f32.gmra.mxu0 %v115
    %v220 = vpop.f32.mrf.mxu0
    %v221 = vadd.f32 %v88, %v220
    %v222 = vpop.f32.mrf.mxu0
    %223 = vmatprep.mubr.f32.mxu0 0.0
    %224 = vmatmul.mubr.f32.gmra.mxu0 %v118
    %v225 = vpop.f32.mrf.mxu0
    %v226 = vadd.f32 %v93, %v225
    %v227 = vpop.f32.mrf.mxu0
    %228 = vdwg.mxu0
    %vm229 = vcmp.gt.f32.partialorder %v191, 0.0
    %vm230 = vcmp.gt.f32.partialorder %v196, 0.0
    %vm231 = vcmp.gt.f32.partialorder %v201, 0.0
    %vm232 = vcmp.gt.f32.partialorder %v206, 0.0
    %vm233 = vcmp.gt.f32.partialorder %v211, 0.0
    %vm234 = vcmp.gt.f32.partialorder %v216, 0.0
    %vm235 = vcmp.gt.f32.partialorder %v221, 0.0
    %vm236 = vcmp.gt.f32.partialorder %v226, 0.0
    %v237 = vmul.f32 %v191, 0.1
    %v238 = vmul.f32 %v196, 0.1
    %v239 = vmul.f32 %v201, 0.1
    %v240 = vmul.f32 %v206, 0.1
    %v241 = vmul.f32 %v211, 0.1
    %v242 = vmul.f32 %v216, 0.1
    %v243 = vmul.f32 %v221, 0.1
    %v244 = vmul.f32 %v226, 0.1
    %v245 = vsel %vm229, %v191, %v237
    %v246 = vsel %vm230, %v196, %v238
    %v247 = vsel %vm231, %v201, %v239
    %v248 = vsel %vm232, %v206, %v240
    %v249 = vsel %vm233, %v211, %v241
    %v250 = vsel %vm234, %v216, %v242
    %v251 = vsel %vm235, %v221, %v243
    %v252 = vsel %vm236, %v226, %v244
    %v253 = vld [vmem:[%s3] sm:$0xff]
    %v254 = vld [vmem:[%s3 + $0x8] sm:$0xff]
    %v255 = vld [vmem:[%s3 + $0x10] sm:$0xff]
    %v256 = vld [vmem:[%s3 + $0x18] sm:$0xff]
    %v257 = vld [vmem:[%s4] sm:$0xff]
    %v258 = vld [vmem:[%s4 + $0x8] sm:$0xff]
    %v259 = vld [vmem:[%s4 + $0x10] sm:$0xff]
    %v260 = vld [vmem:[%s4 + $0x18] sm:$0xff]
    %262 = vset.pattern.permute.xlu0 0
    %263 = vperm.xlu0 %262, %v257
    %v264 = vpop.permute.xlu0 %263
    %267 = vset.pattern.permute.xlu0 0
    %268 = vperm.xlu0 %267, %v258
    %v269 = vpop.permute.xlu0 %268
    %272 = vset.pattern.permute.xlu0 0
    %273 = vperm.xlu0 %272, %v259
    %v274 = vpop.permute.xlu0 %273
    %277 = vset.pattern.permute.xlu0 0
    %278 = vperm.xlu0 %277, %v260
    %v279 = vpop.permute.xlu0 %278
    %vm281 = vcmask 523264
    %v283 = vsel %vm281, %v253, 0
    %v286 = vsel %vm281, %v254, 0
    %v289 = vsel %vm281, %v255, 0
    %v292 = vsel %vm281, %v256, 0
    %294 = vmatprep.subr.mxu0 0.0
    %295 = vmatpush1.msra.mxu0 0.0
    %296 = vmatprep.subr.mxu0 0.0
    %297 = vmatpush1.msra.mxu0 0.0
    %298 = vmatprep.subr.mxu0 0.0
    %299 = vmatpush1.msra.mxu0 0.0
    %300 = vmatprep.subr.mxu0 0.0
    %301 = vmatpush1.msra.mxu0 0.0
    %302 = vmatprep.subr.mxu0 0.0
    %303 = vmatpush1.msra.mxu0 0.0
    %304 = vmatprep.subr.mxu0 0.0
    %305 = vmatpush1.msra.mxu0 0.0
    %306 = vmatprep.subr.mxu0 0.0
    %307 = vmatpush1.msra.mxu0 0.0
    %308 = vmatprep.subr.mxu0 0.0
    %309 = vmatpush1.msra.mxu0 0.0
    %310 = vmatprep.subr.mxu0 0.0
    %311 = vmatpush1.msra.mxu0 %v252
    %312 = vmatprep.subr.mxu0 0.0
    %313 = vmatpush1.msra.mxu0 %v251
    %314 = vmatprep.subr.mxu0 0.0
    %315 = vmatpush1.msra.mxu0 %v250
    %316 = vmatprep.subr.mxu0 0.0
    %317 = vmatpush1.msra.mxu0 %v249
    %318 = vmatprep.subr.mxu0 0.0
    %319 = vmatpush1.msra.mxu0 %v248
    %320 = vmatprep.subr.mxu0 0.0
    %321 = vmatpush1.msra.mxu0 %v247
    %322 = vmatprep.subr.mxu0 0.0
    %323 = vmatpush1.msra.mxu0 %v246
    %324 = vmatprep.subr.mxu0 0.0
    %325 = vmatpush1.msra.mxu0 %v245
    %326 = vmatprep.subr.mxu0 0.0
    %327 = vmatpush2.msra.mxu0 0.0
    %328 = vmatprep.subr.mxu0 0.0
    %329 = vmatpush2.msra.mxu0 0.0
    %330 = vmatprep.subr.mxu0 0.0
    %331 = vmatpush2.msra.mxu0 0.0
    %332 = vmatprep.subr.mxu0 0.0
    %333 = vmatpush2.msra.mxu0 0.0
    %334 = vmatprep.subr.mxu0 0.0
    %335 = vmatpush2.msra.mxu0 0.0
    %336 = vmatprep.subr.mxu0 0.0
    %337 = vmatpush2.msra.mxu0 0.0
    %338 = vmatprep.subr.mxu0 0.0
    %339 = vmatpush2.msra.mxu0 0.0
    %340 = vmatprep.subr.mxu0 0.0
    %341 = vmatpush2.msra.mxu0 0.0
    %342 = vmatprep.subr.mxu0 0.0
    %343 = vmatpush2.msra.mxu0 0.0
    %344 = vmatprep.subr.mxu0 0.0
    %345 = vmatpush2.msra.mxu0 0.0
    %346 = vmatprep.subr.mxu0 0.0
    %347 = vmatpush2.msra.mxu0 0.0
    %348 = vmatprep.subr.mxu0 0.0
    %349 = vmatpush2.msra.mxu0 0.0
    %350 = vmatprep.subr.mxu0 0.0
    %351 = vmatpush2.msra.mxu0 0.0
    %352 = vmatprep.subr.mxu0 0.0
    %353 = vmatpush2.msra.mxu0 0.0
    %354 = vmatprep.subr.mxu0 0.0
    %355 = vmatpush2.msra.mxu0 0.0
    %356 = vmatprep.subr.mxu0 0.0
    %357 = vmatpush2.msra.mxu0 0.0
    %358 = vmatprep.mubr.f32.mxu0 0.0
    %359 = vmatmul.mubr.f32.gmra.mxu0 %v283
    %v360 = vpop.f32.mrf.mxu0
    %v361 = vadd.f32 %v264, %v360
    %v362 = vpop.f32.mrf.mxu0
    %363 = vmatprep.mubr.f32.mxu0 0.0
    %364 = vmatmul.mubr.f32.gmra.mxu0 %v286
    %v365 = vpop.f32.mrf.mxu0
    %v366 = vadd.f32 %v269, %v365
    %v367 = vpop.f32.mrf.mxu0
    %368 = vmatprep.mubr.f32.mxu0 0.0
    %369 = vmatmul.mubr.f32.gmra.mxu0 %v289
    %v370 = vpop.f32.mrf.mxu0
    %v371 = vadd.f32 %v274, %v370
    %v372 = vpop.f32.mrf.mxu0
    %373 = vmatprep.mubr.f32.mxu0 0.0
    %374 = vmatmul.mubr.f32.gmra.mxu0 %v292
    %v375 = vpop.f32.mrf.mxu0
    %v376 = vadd.f32 %v279, %v375
    %v377 = vpop.f32.mrf.mxu0
    %378 = vdwg.mxu0
    %vm379 = vcmp.gt.f32.partialorder %v361, 0.0
    %vm380 = vcmp.gt.f32.partialorder %v366, 0.0
    %vm381 = vcmp.gt.f32.partialorder %v371, 0.0
    %vm382 = vcmp.gt.f32.partialorder %v376, 0.0
    %v383 = vmul.f32 %v361, 0.1
    %v384 = vmul.f32 %v366, 0.1
    %v385 = vmul.f32 %v371, 0.1
    %v386 = vmul.f32 %v376, 0.1
    %v387 = vsel %vm379, %v361, %v383
    %v388 = vsel %vm380, %v366, %v384
    %v389 = vsel %vm381, %v371, %v385
    %v390 = vsel %vm382, %v376, %v386
    %v391 = vld [vmem:[%s5] sm:$0x3]
    %v392 = vld [vmem:[%s6] sm:$0x3]
    %394 = vset.pattern.permute.xlu0 0
    %395 = vperm.xlu0 %394, %v392
    %v396 = vpop.permute.xlu0 %395
    %vm398 = vcmask 261120
    %v400 = vsel %vm398, %v391, 0
    %402 = vmatprep.subr.mxu0 0.0
    %403 = vmatpush1.msra.mxu0 0.0
    %404 = vmatprep.subr.mxu0 0.0
    %405 = vmatpush1.msra.mxu0 0.0
    %406 = vmatprep.subr.mxu0 0.0
    %407 = vmatpush1.msra.mxu0 0.0
    %408 = vmatprep.subr.mxu0 0.0
    %409 = vmatpush1.msra.mxu0 0.0
    %410 = vmatprep.subr.mxu0 0.0
    %411 = vmatpush1.msra.mxu0 0.0
    %412 = vmatprep.subr.mxu0 0.0
    %413 = vmatpush1.msra.mxu0 0.0
    %414 = vmatprep.subr.mxu0 0.0
    %415 = vmatpush1.msra.mxu0 0.0
    %416 = vmatprep.subr.mxu0 0.0
    %417 = vmatpush1.msra.mxu0 0.0
    %418 = vmatprep.subr.mxu0 0.0
    %419 = vmatpush1.msra.mxu0 0.0
    %420 = vmatprep.subr.mxu0 0.0
    %421 = vmatpush1.msra.mxu0 0.0
    %422 = vmatprep.subr.mxu0 0.0
    %423 = vmatpush1.msra.mxu0 0.0
    %424 = vmatprep.subr.mxu0 0.0
    %425 = vmatpush1.msra.mxu0 0.0
    %426 = vmatprep.subr.mxu0 0.0
    %427 = vmatpush1.msra.mxu0 %v390
    %428 = vmatprep.subr.mxu0 0.0
    %429 = vmatpush1.msra.mxu0 %v389
    %430 = vmatprep.subr.mxu0 0.0
    %431 = vmatpush1.msra.mxu0 %v388
    %432 = vmatprep.subr.mxu0 0.0
    %433 = vmatpush1.msra.mxu0 %v387
    %434 = vmatprep.subr.mxu0 0.0
    %435 = vmatpush2.msra.mxu0 0.0
    %436 = vmatprep.subr.mxu0 0.0
    %437 = vmatpush2.msra.mxu0 0.0
    %438 = vmatprep.subr.mxu0 0.0
    %439 = vmatpush2.msra.mxu0 0.0
    %440 = vmatprep.subr.mxu0 0.0
    %441 = vmatpush2.msra.mxu0 0.0
    %442 = vmatprep.subr.mxu0 0.0
    %443 = vmatpush2.msra.mxu0 0.0
    %444 = vmatprep.subr.mxu0 0.0
    %445 = vmatpush2.msra.mxu0 0.0
    %446 = vmatprep.subr.mxu0 0.0
    %447 = vmatpush2.msra.mxu0 0.0
    %448 = vmatprep.subr.mxu0 0.0
    %449 = vmatpush2.msra.mxu0 0.0
    %450 = vmatprep.subr.mxu0 0.0
    %451 = vmatpush2.msra.mxu0 0.0
    %452 = vmatprep.subr.mxu0 0.0
    %453 = vmatpush2.msra.mxu0 0.0
    %454 = vmatprep.subr.mxu0 0.0
    %455 = vmatpush2.msra.mxu0 0.0
    %456 = vmatprep.subr.mxu0 0.0
    %457 = vmatpush2.msra.mxu0 0.0
    %458 = vmatprep.subr.mxu0 0.0
    %459 = vmatpush2.msra.mxu0 0.0
    %460 = vmatprep.subr.mxu0 0.0
    %461 = vmatpush2.msra.mxu0 0.0
    %462 = vmatprep.subr.mxu0 0.0
    %463 = vmatpush2.msra.mxu0 0.0
    %464 = vmatprep.subr.mxu0 0.0
    %465 = vmatpush2.msra.mxu0 0.0
    %466 = vmatprep.mubr.f32.mxu0 0.0
    %467 = vmatmul.mubr.f32.gmra.mxu0 %v400
    %v468 = vpop.f32.mrf.mxu0
    %v469 = vadd.f32 %v396, %v468
    %v470 = vpop.f32.mrf.mxu0
    %471 = vdwg.mxu0
    %vm472 = vcmask 58368
    %473 = vst.msk [vmem:[#allocation2] sm:$0x3] %vm472, %v469
    // Predicated region
    $region30: #{tpu_custom_call.1} parent=1 // pred_check
      _
    $region31: #{tpu_custom_call.1} parent=1 // pred_check_branch
      %475 = sbr.rel (0) target = $region33
    $region32: #{tpu_custom_call.1} parent=1 // pred_region
      %s477 = ssub.s32 32, 32
      %478 = vsyncadd [#allocation3], %s477
      %s480 = sshll.u32 [#allocation2], 4
      %s481 = int_to_ptr.vmem [resolvable:$true] %s480
      %483 = dma.vmem_to_hbm [thread:$0]  %s481, 32, %s7, [#allocation3]
    $region33: #{tpu_custom_call.1} parent=1 // pred_fallthru
      _
    // Predicated region
    $region34: #{tpu_custom_call.1} parent=1 // pred_check
      _
    $region35: #{tpu_custom_call.1} parent=1 // pred_check_branch
      %485 = sbr.rel (0) target = $region37
    $region36: #{tpu_custom_call.1} parent=1 // pred_region
      %486 = dma.done [#allocation3], 32
    $region37: #{tpu_custom_call.1} parent=1 // pred_fallthru
      _
    %487 = vsyncpa [#allocation3], 1

</llo_original>
